<compile_context>
chip_gen: v5e
topology: v5e:2x2
jax: 0.10.0
libtpu: 0.0.40
codegen_flags: <defaults>
</compile_context>

<pallas_src>
import functools
import math

import numpy as np
import jax
import jax.numpy as jnp
from jax import lax
from jax.experimental import pallas as pl
from jax.experimental.pallas import tpu as pltpu


# -----------------------------------------------------------------------------
# Hardware queries (generation-aware budgets; conservative fallbacks).
# -----------------------------------------------------------------------------
def _vmem_capacity_bytes():
    try:
        cap = int(pltpu.get_tpu_info().vmem_capacity_bytes)
        if cap > 0:
            return cap
    except Exception:
        pass
    return 64 << 20          # conservative: v7x per-TensorCore VMEM


def _num_tensorcores():
    try:
        kind = jax.devices()[0].device_kind.lower()
    except Exception:
        return 1
    return 2 if ("v7" in kind or "7x" in kind) else 1


# -----------------------------------------------------------------------------
# Kernel: separable nearest-neighbour selection on a block of B images.
#   x_ref  : (B, H_in,  W_in)
#   r_ref  : (H_out, H_in)   one-hot row selector
#   ct_ref : (W_in,  W_out)  one-hot column selector (transposed)
#   o_ref  : (B, H_out, W_out)
# -----------------------------------------------------------------------------
def _make_nearest_kernel(compute_dtype, precision):
    def kernel(x_ref, r_ref, ct_ref, o_ref):
        x = x_ref[...].astype(compute_dtype)            # (B, H_in, W_in)
        r = r_ref[...]                                   # (H_out, H_in)
        ct = ct_ref[...]                                 # (W_in, W_out)
        b = x.shape[0]
        r_b = jnp.broadcast_to(r, (b,) + r.shape)        # tiny (B, H_out, H_in)

        # Stage 1 — H selection: standard batched matmul 'boh,bhw->bow'.
        xh = lax.dot_general(r_b, x, (((2,), (1,)), ((0,), (0,))),
                             preferred_element_type=jnp.float32,
                             precision=precision)        # (B, H_out, W_in) f32

        # Stage 2 — W selection: one big lane-dense matmul over B*H_out rows.
        out = lax.dot_general(xh.astype(compute_dtype), ct,
                              (((2,), (0,)), ((), ())),
                              preferred_element_type=jnp.float32,
                              precision=precision)       # (B, H_out, W_out) f32

        o_ref[...] = out.astype(o_ref.dtype)
    return kernel


# -----------------------------------------------------------------------------
# Host-side helpers.
# -----------------------------------------------------------------------------
def _output_size(in_hw, size, scale_factor):
    if size is not None:
        if isinstance(size, int):
            return int(size), int(size)
        return int(size[0]), int(size[1])
    sf = scale_factor
    if isinstance(sf, (int, float)):
        sf = (sf, sf)
    # PyTorch: out = floor(in * scale_factor)
    return (int(math.floor(in_hw[0] * float(sf[0]))),
            int(math.floor(in_hw[1] * float(sf[1]))))


def _nearest_indices(in_size, out_size):
    # PyTorch 'nearest' rule: src = floor(dst * in / out)  (exact in integers)
    return (np.arange(out_size) * in_size) // out_size


@functools.lru_cache(maxsize=128)
def _selectors(h_in, h_out, w_in, w_out, sel_dtype):
    """Tiny one-hot selectors, built once per (shape, dtype) and kept on device."""
    ri = _nearest_indices(h_in, h_out)
    ci = _nearest_indices(w_in, w_out)
    r = jnp.asarray(ri[:, None] == np.arange(h_in)[None, :], dtype=sel_dtype)
    ct = jnp.asarray(np.arange(w_in)[:, None] == ci[None, :], dtype=sel_dtype)
    return r, ct


# Cap on images per grid step: keeps the batched stage-1 matmul (and its
# possible unrolling in Mosaic) compile-friendly while still giving large DMAs.
_MAX_IMAGES_PER_BLOCK = 256


def interpolate_nearest(x, size=None, scale_factor=None):
    """Equivalent of F.interpolate(x, size=size, scale_factor=scale_factor)
    with the default mode='nearest' for a 4D NCHW tensor."""
    if x.ndim != 4:
        raise ValueError("Interpolate Pallas kernel expects a 4D NCHW tensor.")
    if (size is None) == (scale_factor is None):
        raise ValueError("exactly one of size or scale_factor must be given")

    N, C, H_in, W_in = x.shape
    H_out, W_out = _output_size((H_in, W_in), size, scale_factor)
    if (H_out, W_out) == (H_in, W_in):
        return x

    dtype = x.dtype
    itemsize = dtype.itemsize
    is_bf16 = dtype == np.dtype(jnp.bfloat16)
    compute_dtype = jnp.bfloat16 if is_bf16 else jnp.float32
    # HIGHEST precision keeps the f32 one-hot selection bit-exact on the MXU;
    # the bf16 path is exact with bf16 selectors already.
    precision = None if is_bf16 else lax.Precision.HIGHEST
    sel_isz = np.dtype(compute_dtype).itemsize

    NC = N * C
    HW_in, HW_out = H_in * W_in, H_out * W_out

    # --- generation-aware VMEM budgeting -------------------------------------
    capacity = _vmem_capacity_bytes()
    vmem_cap = min((capacity * 3) // 4, 96 << 20)     # ~48 MiB on v7x, ~96 MiB on v5e/v6e
    sel_resident = 2 * (H_out * H_in + W_in * W_out) * sel_isz   # double-buffered, tiny
    per_img = (2 * HW_in * itemsize                   # double-buffered input block
               + 2 * HW_out * itemsize                # double-buffered output block
               + H_out * H_in * sel_isz               # broadcast selector R
               + H_out * W_in * (4 + sel_isz)         # stage-1 f32 result + cast
               + HW_out * 4)                          # stage-2 f32 result
    headroom = 4 << 20
    data_budget = vmem_cap - sel_resident - headroom

    if data_budget < per_img:
        # TODO(synk): spatial size too large for a single VMEM-resident image;
        # fall back to a plain-JAX gather (not a Pallas kernel).
        ri = _nearest_indices(H_in, H_out)
        ci = _nearest_indices(W_in, W_out)
        return x[:, :, ri, :][:, :, :, ci]

    b_vmem = max(1, data_budget // per_img)
    # A few grid steps for DMA/compute overlap; on v7x also lets the parallel
    # axis be sharded across the 2 TensorCores.  No needless halving on v5e/v6e.
    min_steps = 4 * _num_tensorcores()
    B = int(max(1, min(b_vmem, -(-NC // min_steps), _MAX_IMAGES_PER_BLOCK)))
    n_blocks = -(-NC // B)
    NC_pad = n_blocks * B

    x3 = x.reshape(NC, H_in, W_in)
    if NC_pad != NC:
        x3 = jnp.pad(x3, ((0, NC_pad - NC), (0, 0), (0, 0)))

    R, CT = _selectors(H_in, H_out, W_in, W_out, compute_dtype)

    vmem_limit = int(min(vmem_cap, max(B * per_img + sel_resident + headroom, 32 << 20)))

    cost = pl.CostEstimate(
        flops=2 * NC_pad * H_out * W_in * (H_in + W_out),
        transcendentals=0,
        bytes_accessed=int(NC_pad * (HW_in + HW_out) * itemsize
                           + (H_out * H_in + W_in * W_out) * sel_isz),
    )

    out3 = pl.pallas_call(
        _make_nearest_kernel(compute_dtype, precision),
        out_shape=jax.ShapeDtypeStruct((NC_pad, H_out, W_out), dtype),
        grid_spec=pltpu.PrefetchScalarGridSpec(
            num_scalar_prefetch=0,
            grid=(n_blocks,),
            in_specs=[
                pl.BlockSpec((B, H_in, W_in), lambda i: (i, 0, 0)),
                pl.BlockSpec((H_out, H_in), lambda i: (0, 0)),    # grid-resident, ~KB
                pl.BlockSpec((W_in, W_out), lambda i: (0, 0)),    # grid-resident, ~KB
            ],
            out_specs=pl.BlockSpec((B, H_out, W_out), lambda i: (i, 0, 0)),
        ),
        compiler_params=pltpu.CompilerParams(
            dimension_semantics=("parallel",),
            vmem_limit_bytes=vmem_limit),
        cost_estimate=cost,
    )(x3, R, CT)

    return out3[:NC].reshape(N, C, H_out, W_out)


class Interpolate:
    """JAX/Pallas port of the nn.Module wrapper for F.interpolate."""

    def __init__(self, size=None, scale_factor=None):
        self.size, self.scale_factor = (size, scale_factor)

    def __call__(self, x):
        return interpolate_nearest(x, size=self.size, scale_factor=self.scale_factor)


if __name__ == "__main__":
    key = jax.random.PRNGKey(0)
    # Module has no learnable parameters; only an input tensor is needed.
    x = jax.random.normal(key, (2, 4, 16, 16), dtype=jnp.float32)

    # scale_factor path (the typical resnet-encoder use: nearest x2 upsample)
    y = jax.block_until_ready(Interpolate(scale_factor=2)(x))
    assert y.shape == (2, 4, 32, 32), y.shape
    ref = jnp.repeat(jnp.repeat(x, 2, axis=2), 2, axis=3)
    assert jnp.allclose(y, ref), float(jnp.max(jnp.abs(y - ref)))

    # explicit-size path with non-integer scaling
    y2 = jax.block_until_ready(Interpolate(size=(24, 20))(x))
    ri = (np.arange(24) * 16) // 24
    ci = (np.arange(20) * 16) // 20
    ref2 = x[:, :, ri, :][:, :, :, ci]
    assert y2.shape == (2, 4, 24, 20), y2.shape
    assert jnp.allclose(y2, ref2), float(jnp.max(jnp.abs(y2 - ref2)))

    # bf16 input exercises the bf16-selector path (exact for nearest selection)
    xb = x.astype(jnp.bfloat16)
    yb = jax.block_until_ready(Interpolate(scale_factor=2)(xb))
    refb = jnp.repeat(jnp.repeat(xb, 2, axis=2), 2, axis=3)
    assert yb.dtype == jnp.bfloat16 and bool(jnp.all(yb == refb))

    # odd N*C exercises the padded-block path; also a downsample case
    x5 = jax.random.normal(jax.random.PRNGKey(1), (1, 5, 16, 16), dtype=jnp.float32)
    y5 = jax.block_until_ready(Interpolate(size=(8, 8))(x5))
    ri5 = (np.arange(8) * 16) // 8
    ref5 = x5[:, :, ri5, :][:, :, :, ri5]
    assert y5.shape == (1, 5, 8, 8), y5.shape
    assert jnp.allclose(y5, ref5), float(jnp.max(jnp.abs(y5 - ref5)))

    print("KERNEL_OK")
</pallas_src>

<mosaic_0001>
module attributes {stable_mosaic.version = 11 : i64} {
  func.func @kernel(%arg0: i32, %arg1: memref<2x16x16xf32, #tpu.memory_space<vmem>>, %arg2: memref<32x16xf32, #tpu.memory_space<vmem>>, %arg3: memref<16x32xf32, #tpu.memory_space<vmem>>, %arg4: memref<2x32x32xf32, #tpu.memory_space<vmem>>) attributes {dimension_semantics = [#tpu.dimension_semantics<parallel>], iteration_bounds = array<i64: 4>, scalar_prefetch = 0 : i64, scratch_operands = 0 : i64, tpu.core_type = #tpu.core_type<tc>, window_params = [{transform_indices = @transform_0, window_bounds = array<i64: 2, 16, 16>}, {pipeline_mode = #tpu.pipeline_mode<synchronous>, transform_indices = @transform_1, window_bounds = array<i64: 32, 16>}, {pipeline_mode = #tpu.pipeline_mode<synchronous>, transform_indices = @transform_2, window_bounds = array<i64: 16, 32>}, {transform_indices = @transform_3, window_bounds = array<i64: 2, 32, 32>}]} {
    %c0 = arith.constant 0 : index
    %c0_0 = arith.constant 0 : index
    %c0_1 = arith.constant 0 : index
    %0 = vector.load %arg1[%c0, %c0_0, %c0_1] : memref<2x16x16xf32, #tpu.memory_space<vmem>>, vector<2x16x16xf32>
    %c0_2 = arith.constant 0 : index
    %c0_3 = arith.constant 0 : index
    %1 = vector.load %arg2[%c0_2, %c0_3] : memref<32x16xf32, #tpu.memory_space<vmem>>, vector<32x16xf32>
    %c0_4 = arith.constant 0 : index
    %c0_5 = arith.constant 0 : index
    %2 = vector.load %arg3[%c0_4, %c0_5] : memref<16x32xf32, #tpu.memory_space<vmem>>, vector<16x32xf32>
    %3 = vector.shape_cast %1 : vector<32x16xf32> to vector<1x32x16xf32>
    %4 = vector.broadcast %3 : vector<1x32x16xf32> to vector<2x32x16xf32>
    %cst = arith.constant dense<0.000000e+00> : vector<2x32x16xf32>
    %5 = tpu.matmul %4, %0, %cst {dimension_numbers = #tpu.dot_dimension_numbers<[2], [1], [1], [2], [0, 0, 0, 1, 1, 2], [0], [0]>, precision = #tpu.contract_precision<fp32>} : vector<2x32x16xf32>, vector<2x16x16xf32>, vector<2x32x16xf32> -> vector<2x32x16xf32>
    %cst_6 = arith.constant dense<0.000000e+00> : vector<2x32x32xf32>
    %6 = tpu.matmul %5, %2, %cst_6 {dimension_numbers = #tpu.dot_dimension_numbers<[2], [0], [0, 1], [1], [0, 0, 0, 1, 1, 1], [], []>, precision = #tpu.contract_precision<fp32>} : vector<2x32x16xf32>, vector<16x32xf32>, vector<2x32x32xf32> -> vector<2x32x32xf32>
    %c0_7 = arith.constant 0 : index
    %c0_8 = arith.constant 0 : index
    %c0_9 = arith.constant 0 : index
    %7 = vector.load %arg4[%c0_7, %c0_8, %c0_9] : memref<2x32x32xf32, #tpu.memory_space<vmem>>, vector<2x32x32xf32>
    tpu.vector_store %arg4[%c0_7, %c0_8, %c0_9], %6 {strides = array<i32>} : memref<2x32x32xf32, #tpu.memory_space<vmem>>, vector<2x32x32xf32>,
    return
  }
  func.func @transform_0(%arg0: i32) -> (i32, i32, i32) {
    %c0_i32 = arith.constant 0 : i32
    %c0_i32_0 = arith.constant 0 : i32
    %c0_i32_1 = arith.constant 0 : i32
    return %arg0, %c0_i32, %c0_i32_0 : i32, i32, i32
  }
  func.func @transform_1(%arg0: i32) -> (i32, i32) {
    %c0_i32 = arith.constant 0 : i32
    %c0_i32_0 = arith.constant 0 : i32
    %c0_i32_1 = arith.constant 0 : i32
    return %c0_i32, %c0_i32_0 : i32, i32
  }
  func.func @transform_2(%arg0: i32) -> (i32, i32) {
    %c0_i32 = arith.constant 0 : i32
    %c0_i32_0 = arith.constant 0 : i32
    %c0_i32_1 = arith.constant 0 : i32
    return %c0_i32, %c0_i32_0 : i32, i32
  }
  func.func @transform_3(%arg0: i32) -> (i32, i32, i32) {
    %c0_i32 = arith.constant 0 : i32
    %c0_i32_0 = arith.constant 0 : i32
    %c0_i32_1 = arith.constant 0 : i32
    return %arg0, %c0_i32, %c0_i32_0 : i32, i32, i32
  }
}

</mosaic_0001>

<llo_original>
// kernel: tpu_custom_call.1
$region0: #{tpu_custom_call.1}
  #allocation0 [shape = 'u32[]', space=smem, size = 0x4, offset = 0x4, fixed_abs, tag = 'smem constant byte address 0x4 - core index']
  #allocation1 [shape = 'u32[72,128]{1,0:T(1,128)}', space=vmem, size = 0x9000, scoped, tag = 'internal scratch']
  %s0 = inlined_call_operand.hbm [shape: f32[8,16,16], index: 0, kind: input, shape index: {}]
  %s1 = inlined_call_operand.vmem [shape: f32[32,16], index: 1, kind: input, shape index: {}]
  %s2 = inlined_call_operand.vmem [shape: f32[16,32], index: 2, kind: input, shape index: {}]
  %s3 = inlined_call_operand.hbm [shape: f32[8,32,32], index: 3, kind: output, shape index: {}]
  %s4 = sld [smem:[#allocation0]]
  $region49: #{tpu_custom_call.1} parent=0
    _
  %s6 = ssub.s32 1, %s4
  %s7 = scalar_select 0, %s6, %s4
  $region1: #{tpu_custom_call.1} parent=0
    #allocation2 [shape = 'u8[32768]{0}', space=vmem, size = 0x8000, scoped, tag = 'input window, operand 0']
    #allocation3 [shape = 's32[2]{0}', space=sflag, size = 0x8, scoped, tag = 'scoped memory for tpu_custom_call.1']
    #allocation4 [shape = 's32[2]{0}', space=sflag, size = 0x8, scoped, tag = 'scoped memory for tpu_custom_call.1']
    #allocation5 [shape = 'u8[65536]{0}', space=vmem, size = 0x10000, scoped, tag = 'output window, operand 0']
    %8 = vsyncpa [#allocation3], 0
    %s9 = scalar_lea.sflag [#allocation3], 1
    %10 = vsyncpa %s9, 0
    %11 = vsyncpa [#allocation4], 0
    %s12 = scalar_lea.sflag [#allocation4], 1
    %13 = vsyncpa %s12, 0
    loop: start=0, step=1, limit=6
    $region2: #{tpu_custom_call.1} parent=1 // loop_pre_header
      _
    $region3: #{tpu_custom_call.1} parent=1 // loop_header
      %s15 = sphi 0, %s19
      %p16 = scmp.ge.s32.totalorder %s15, 6
      %s25 = sphi 0, %s27
      %s28 = sphi 0, %s25
      %s29 = sphi 0, %s28
      %s45 = sphi 0, %s29
      %s49 = sphi 0, %s49
      %s51 = sphi 0, %s49
      %s52 = sphi 0, %s51
      %s66 = sphi 0, %s52
      %s70 = sphi 0, %s70
      %s72 = sphi 0, %s70
      %s73 = sphi 0, %s72
      %s87 = sphi 0, %s73
      %s93 = sphi 0, %s95
      %s96 = sphi 0, %s93
      %s97 = sphi 0, %s96
      %s113 = sphi 0, %s97
    $region4: #{tpu_custom_call.1} parent=1 // loop_header_branch
      %18 = sbr.rel (%p16) target = $region8
    $region5: #{tpu_custom_call.1} parent=1 // loop_body
      %s20 = ssub.s32 %s15, 1
      %s21 = ssub.s32 %s15, 2
      %s22 = sadd.s32 %s15, 1
      %s23 = ssub.s32 %s15, %s22
      %p24 = scmp.eq.s32.totalorder %s23, 0
      %s26 = sadd.s32 %s25, 1
      %s27 = scalar_select %p24, %s25, %s26
      %p30 = pneg %p24
      %p31 = scmp.eq.s32.totalorder %s15, 3
      %p32 = por %p30, %p31
      %p33 = scmp.ne.s32.totalorder %s25, %s28
      %p34 = scmp.eq.s32.totalorder %s15, 0
      %p35 = por %p33, %p34
      %p36 = scmp.ne.s32.totalorder %s25, %s28
      %p37 = scmp.eq.s32.totalorder %s20, 3
      %p38 = por %p36, %p37
      %p39 = scmp.ne.s32.totalorder %s28, %s29
      %p40 = scmp.eq.s32.totalorder %s20, 0
      %p41 = por %p39, %p40
      %p42 = scmp.ne.s32.totalorder %s28, %s29
      %p43 = scmp.eq.s32.totalorder %s21, 3
      %p44 = por %p42, %p43
      %p46 = scmp.ne.s32.totalorder %s29, %s45
      %p47 = scmp.eq.s32.totalorder %s21, 0
      %p48 = por %p46, %p47
      %s50 = sadd.s32 %s49, 1
      %p53 = scmp.eq.s32.totalorder %s15, 3
      %p54 = scmp.ne.s32.totalorder %s49, %s51
      %p55 = scmp.eq.s32.totalorder %s15, 0
      %p56 = por %p54, %p55
      %p57 = scmp.ne.s32.totalorder %s49, %s51
      %p58 = scmp.eq.s32.totalorder %s20, 3
      %p59 = por %p57, %p58
      %p60 = scmp.ne.s32.totalorder %s51, %s52
      %p61 = scmp.eq.s32.totalorder %s20, 0
      %p62 = por %p60, %p61
      %p63 = scmp.ne.s32.totalorder %s51, %s52
      %p64 = scmp.eq.s32.totalorder %s21, 3
      %p65 = por %p63, %p64
      %p67 = scmp.ne.s32.totalorder %s52, %s66
      %p68 = scmp.eq.s32.totalorder %s21, 0
      %p69 = por %p67, %p68
      %s71 = sadd.s32 %s70, 1
      %p74 = scmp.eq.s32.totalorder %s15, 3
      %p75 = scmp.ne.s32.totalorder %s70, %s72
      %p76 = scmp.eq.s32.totalorder %s15, 0
      %p77 = por %p75, %p76
      %p78 = scmp.ne.s32.totalorder %s70, %s72
      %p79 = scmp.eq.s32.totalorder %s20, 3
      %p80 = por %p78, %p79
      %p81 = scmp.ne.s32.totalorder %s72, %s73
      %p82 = scmp.eq.s32.totalorder %s20, 0
      %p83 = por %p81, %p82
      %p84 = scmp.ne.s32.totalorder %s72, %s73
      %p85 = scmp.eq.s32.totalorder %s21, 3
      %p86 = por %p84, %p85
      %p88 = scmp.ne.s32.totalorder %s73, %s87
      %p89 = scmp.eq.s32.totalorder %s21, 0
      %p90 = por %p88, %p89
      %s91 = ssub.s32 %s15, %s22
      %p92 = scmp.eq.s32.totalorder %s91, 0
      %s94 = sadd.s32 %s93, 1
      %s95 = scalar_select %p92, %s93, %s94
      %p98 = pneg %p92
      %p99 = scmp.eq.s32.totalorder %s15, 3
      %p100 = por %p98, %p99
      %p101 = scmp.ne.s32.totalorder %s93, %s96
      %p102 = scmp.eq.s32.totalorder %s15, 0
      %p103 = por %p101, %p102
      %p104 = scmp.ne.s32.totalorder %s93, %s96
      %p105 = scmp.eq.s32.totalorder %s20, 3
      %p106 = por %p104, %p105
      %p107 = scmp.ne.s32.totalorder %s96, %s97
      %p108 = scmp.eq.s32.totalorder %s20, 0
      %p109 = por %p107, %p108
      %p110 = scmp.ne.s32.totalorder %s96, %s97
      %p111 = scmp.eq.s32.totalorder %s21, 3
      %p112 = por %p110, %p111
      %p114 = scmp.ne.s32.totalorder %s97, %s113
      %p115 = scmp.eq.s32.totalorder %s21, 0
      %p116 = por %p114, %p115
      %p117 = scmp.le.s32.totalorder 1, %s15
      %p118 = scmp.lt.s32.totalorder %s15, 5
      %p119 = pnand %p117, %p118
      %p120 = pneg %p119
      // Predicated region
      $region9: #{tpu_custom_call.1} parent=5 // pred_check
        _
      $region10: #{tpu_custom_call.1} parent=5 // pred_check_branch
        %122 = sbr.rel (%p119) target = $region12
      $region11: #{tpu_custom_call.1} parent=5 // pred_region
        %s123 = ssub.s32 %s15, 1
        // Predicated region
        $region13: #{tpu_custom_call.1} parent=11 // pred_check
          %p124 = pneg %p62
        $region14: #{tpu_custom_call.1} parent=11 // pred_check_branch
          %126 = sbr.rel (%p124) target = $region16
        $region15: #{tpu_custom_call.1} parent=11 // pred_region
          _
        $region16: #{tpu_custom_call.1} parent=11 // pred_fallthru
          _
        // Predicated region
        $region17: #{tpu_custom_call.1} parent=11 // pred_check
          %p127 = pneg %p83
        $region18: #{tpu_custom_call.1} parent=11 // pred_check_branch
          %129 = sbr.rel (%p127) target = $region20
        $region19: #{tpu_custom_call.1} parent=11 // pred_region
          _
        $region20: #{tpu_custom_call.1} parent=11 // pred_fallthru
          _
      $region12: #{tpu_custom_call.1} parent=5 // pred_fallthru
        _
      %p130 = scmp.lt.s32.totalorder %s15, 4
      // Predicated region
      $region21: #{tpu_custom_call.1} parent=5 // pred_check
        %p131 = pneg %p130
      $region22: #{tpu_custom_call.1} parent=5 // pred_check_branch
        %133 = sbr.rel (%p131) target = $region24
      $region23: #{tpu_custom_call.1} parent=5 // pred_region
        // Predicated region
        $region25: #{tpu_custom_call.1} parent=23 // pred_check
          %p134 = pneg %p35
        $region26: #{tpu_custom_call.1} parent=23 // pred_check_branch
          %136 = sbr.rel (%p134) target = $region28
        $region27: #{tpu_custom_call.1} parent=23 // pred_region
          %s137 = sand.u32 %s25, 1
          %s138 = scalar_lea.sflag [#allocation3], %s137
          %s139 = sand.u32 %s25, 1
          %s140 = smul.addr %s139, 32
          %s141 = scalar_lea.vmem [#allocation2], %s140
          %s142 = smul.u32 2, %s15
          %144 = vsyncadd %s138, 0
          %s145 = smul.addr %s142, 2
          %s146 = smul.addr %s145, 8
          %s147 = scalar_lea.hbm %s0, %s146
          %s148 = sshll.u32 %s147, 4
          %s149 = int_to_ptr.hbm [resolvable:$true] %s148
          %s150 = sshll.u32 %s141, 4
          %s151 = int_to_ptr.vmem [resolvable:$true] %s150
          %156 = dma.hbm_to_vmem [thread:$0]  %s149, 512, %s151, %s138, 128, 128, 8
        $region28: #{tpu_custom_call.1} parent=23 // pred_fallthru
          _
      $region24: #{tpu_custom_call.1} parent=5 // pred_fallthru
        _
      %p157 = scmp.le.s32.totalorder 1, %s15
      %p158 = scmp.lt.s32.totalorder %s15, 5
      %p159 = pnand %p157, %p158
      %p160 = pneg %p159
      // Predicated region
      $region29: #{tpu_custom_call.1} parent=5 // pred_check
        _
      $region30: #{tpu_custom_call.1} parent=5 // pred_check_branch
        %162 = sbr.rel (%p159) target = $region32
      $region31: #{tpu_custom_call.1} parent=5 // pred_region
        %s163 = ssub.s32 %s15, 1
        %s164 = sand.u32 %s28, 1
        %s165 = scalar_lea.sflag [#allocation3], %s164
        %s166 = sand.u32 %s28, 1
        %s167 = smul.addr %s166, 32
        %s168 = scalar_lea.vmem [#allocation2], %s167
        // Predicated region
        $region33: #{tpu_custom_call.1} parent=31 // pred_check
          %p169 = pneg %p41
        $region34: #{tpu_custom_call.1} parent=31 // pred_check_branch
          %171 = sbr.rel (%p169) target = $region36
        $region35: #{tpu_custom_call.1} parent=31 // pred_region
          %173 = dma.done %s165, 512
        $region36: #{tpu_custom_call.1} parent=31 // pred_fallthru
          _
        %s174 = sand.u32 %s28, 1
        %s175 = scalar_lea.sflag [#allocation3], %s174
        %s176 = sand.u32 %s28, 1
        %s177 = smul.addr %s176, 32
        %s178 = scalar_lea.vmem [#allocation2], %s177
        %p179 = pneg %p41
        %p180 = pneg %p38
        %p181 = pneg %p62
        %p182 = pneg %p59
        %p183 = pneg %p83
        %p184 = pneg %p80
        %p185 = pneg %p109
        %p186 = pneg %p106
        %s187 = sand.u32 %s96, 1
        %s188 = scalar_lea.sflag [#allocation4], %s187
        %s189 = sand.u32 %s96, 1
        %s190 = smul.addr %s189, 64
        %s191 = scalar_lea.vmem [#allocation5], %s190
        %s192 = smul.u32 2, %s20
        %s193 = smul.u32 2, %s20
        %v194 = vld [vmem:[%s168] sm:$0xff]
        %v195 = vld [vmem:[%s168 + $0x8] sm:$0xff]
        %v196 = vld [vmem:[%s168 + $0x10] sm:$0xff]
        %v197 = vld [vmem:[%s168 + $0x18] sm:$0xff]
        %v198 = vld [vmem:[%s1] sm:$0xff]
        %v199 = vld [vmem:[%s1 + $0x8] sm:$0xff]
        %v200 = vld [vmem:[%s1 + $0x10] sm:$0xff]
        %v201 = vld [vmem:[%s1 + $0x18] sm:$0xff]
        %v202 = vld [vmem:[%s2] sm:$0xff]
        %v203 = vld [vmem:[%s2 + $0x8] sm:$0xff]
        %vm204 = vcmask 130048
        %v206 = vsel %vm204, %v198, 0
        %v209 = vsel %vm204, %v199, 0
        %v212 = vsel %vm204, %v200, 0
        %v215 = vsel %vm204, %v201, 0
        %217 = vmatpush.msra.mxu0 0.0
        %218 = vmatpush.msra.mxu0 0.0
        %219 = vmatpush.msra.mxu0 0.0
        %220 = vmatpush.msra.mxu0 0.0
        %221 = vmatpush.msra.mxu0 0.0
        %222 = vmatpush.msra.mxu0 0.0
        %223 = vmatpush.msra.mxu0 0.0
        %224 = vmatpush.msra.mxu0 0.0
        %225 = vmatpush.msra.mxu0 0.0
        %226 = vmatpush.msra.mxu0 0.0
        %227 = vmatpush.msra.mxu0 0.0
        %228 = vmatpush.msra.mxu0 0.0
        %229 = vmatpush.msra.mxu0 0.0
        %230 = vmatpush.msra.mxu0 0.0
        %v231 = vand.u32 %v195, 4294901760
        %232 = vmatpush.msra.mxu0 %v231
        %v233 = vand.u32 %v194, 4294901760
        %234 = vmatpush.msra.mxu0 %v233
        %v235 = vand.u32 %v206, 4294901760
        %v236 = vsub.f32 %v206, %v235
        %v237 = vand.u32 %v236, 4294901760
        %v238 = vsub.f32 %v236, %v237
        %v239 = vand.u32 %v238, 4294901760
        %240 = vmatmul.f32.gmra.mxu0 %v239
        %v241 = vpop.f32.mrf.mxu0
        %v242 = vadd.f32 0.0, %v241
        %v243 = vand.u32 %v209, 4294901760
        %v244 = vsub.f32 %v209, %v243
        %v245 = vand.u32 %v244, 4294901760
        %v246 = vsub.f32 %v244, %v245
        %v247 = vand.u32 %v246, 4294901760
        %248 = vmatmul.f32.gmra.mxu0 %v247
        %v249 = vpop.f32.mrf.mxu0
        %v250 = vadd.f32 0.0, %v249
        %v251 = vand.u32 %v212, 4294901760
        %v252 = vsub.f32 %v212, %v251
        %v253 = vand.u32 %v252, 4294901760
        %v254 = vsub.f32 %v252, %v253
        %v255 = vand.u32 %v254, 4294901760
        %256 = vmatmul.f32.gmra.mxu0 %v255
        %v257 = vpop.f32.mrf.mxu0
        %v258 = vadd.f32 0.0, %v257
        %v259 = vand.u32 %v215, 4294901760
        %v260 = vsub.f32 %v215, %v259
        %v261 = vand.u32 %v260, 4294901760
        %v262 = vsub.f32 %v260, %v261
        %v263 = vand.u32 %v262, 4294901760
        %264 = vmatmul.f32.gmra.mxu0 %v263
        %v265 = vpop.f32.mrf.mxu0
        %v266 = vadd.f32 0.0, %v265
        %267 = vdwg.mxu0
        %268 = vmatpush.msra.mxu0 0.0
        %269 = vmatpush.msra.mxu0 0.0
        %270 = vmatpush.msra.mxu0 0.0
        %271 = vmatpush.msra.mxu0 0.0
        %272 = vmatpush.msra.mxu0 0.0
        %273 = vmatpush.msra.mxu0 0.0
        %274 = vmatpush.msra.mxu0 0.0
        %275 = vmatpush.msra.mxu0 0.0
        %276 = vmatpush.msra.mxu0 0.0
        %277 = vmatpush.msra.mxu0 0.0
        %278 = vmatpush.msra.mxu0 0.0
        %279 = vmatpush.msra.mxu0 0.0
        %280 = vmatpush.msra.mxu0 0.0
        %281 = vmatpush.msra.mxu0 0.0
        %v282 = vand.u32 %v195, 4294901760
        %v283 = vsub.f32 %v195, %v282
        %v284 = vand.u32 %v283, 4294901760
        %v285 = vsub.f32 %v283, %v284
        %v286 = vand.u32 %v285, 4294901760
        %287 = vmatpush.msra.mxu0 %v286
        %v288 = vand.u32 %v194, 4294901760
        %v289 = vsub.f32 %v194, %v288
        %v290 = vand.u32 %v289, 4294901760
        %v291 = vsub.f32 %v289, %v290
        %v292 = vand.u32 %v291, 4294901760
        %293 = vmatpush.msra.mxu0 %v292
        %v294 = vand.u32 %v206, 4294901760
        %295 = vmatmul.f32.gmra.mxu0 %v294
        %v296 = vpop.f32.mrf.mxu0
        %v297 = vadd.f32 %v242, %v296
        %v298 = vand.u32 %v209, 4294901760
        %299 = vmatmul.f32.gmra.mxu0 %v298
        %v300 = vpop.f32.mrf.mxu0
        %v301 = vadd.f32 %v250, %v300
        %v302 = vand.u32 %v212, 4294901760
        %303 = vmatmul.f32.gmra.mxu0 %v302
        %v304 = vpop.f32.mrf.mxu0
        %v305 = vadd.f32 %v258, %v304
        %v306 = vand.u32 %v215, 4294901760
        %307 = vmatmul.f32.gmra.mxu0 %v306
        %v308 = vpop.f32.mrf.mxu0
        %v309 = vadd.f32 %v266, %v308
        %310 = vdwg.mxu0
        %311 = vmatpush.msra.mxu0 0.0
        %312 = vmatpush.msra.mxu0 0.0
        %313 = vmatpush.msra.mxu0 0.0
        %314 = vmatpush.msra.mxu0 0.0
        %315 = vmatpush.msra.mxu0 0.0
        %316 = vmatpush.msra.mxu0 0.0
        %317 = vmatpush.msra.mxu0 0.0
        %318 = vmatpush.msra.mxu0 0.0
        %319 = vmatpush.msra.mxu0 0.0
        %320 = vmatpush.msra.mxu0 0.0
        %321 = vmatpush.msra.mxu0 0.0
        %322 = vmatpush.msra.mxu0 0.0
        %323 = vmatpush.msra.mxu0 0.0
        %324 = vmatpush.msra.mxu0 0.0
        %v325 = vand.u32 %v195, 4294901760
        %v326 = vsub.f32 %v195, %v325
        %327 = vmatpush.msra.mxu0 %v326
        %v328 = vand.u32 %v194, 4294901760
        %v329 = vsub.f32 %v194, %v328
        %330 = vmatpush.msra.mxu0 %v329
        %v331 = vand.u32 %v206, 4294901760
        %v332 = vsub.f32 %v206, %v331
        %333 = vmatmul.f32.gmra.mxu0 %v332
        %v334 = vpop.f32.mrf.mxu0
        %v335 = vadd.f32 %v297, %v334
        %v336 = vand.u32 %v209, 4294901760
        %v337 = vsub.f32 %v209, %v336
        %338 = vmatmul.f32.gmra.mxu0 %v337
        %v339 = vpop.f32.mrf.mxu0
        %v340 = vadd.f32 %v301, %v339
        %v341 = vand.u32 %v212, 4294901760
        %v342 = vsub.f32 %v212, %v341
        %343 = vmatmul.f32.gmra.mxu0 %v342
        %v344 = vpop.f32.mrf.mxu0
        %v345 = vadd.f32 %v305, %v344
        %v346 = vand.u32 %v215, 4294901760
        %v347 = vsub.f32 %v215, %v346
        %348 = vmatmul.f32.gmra.mxu0 %v347
        %v349 = vpop.f32.mrf.mxu0
        %v350 = vadd.f32 %v309, %v349
        %351 = vdwg.mxu0
        %352 = vmatpush.msra.mxu0 0.0
        %353 = vmatpush.msra.mxu0 0.0
        %354 = vmatpush.msra.mxu0 0.0
        %355 = vmatpush.msra.mxu0 0.0
        %356 = vmatpush.msra.mxu0 0.0
        %357 = vmatpush.msra.mxu0 0.0
        %358 = vmatpush.msra.mxu0 0.0
        %359 = vmatpush.msra.mxu0 0.0
        %360 = vmatpush.msra.mxu0 0.0
        %361 = vmatpush.msra.mxu0 0.0
        %362 = vmatpush.msra.mxu0 0.0
        %363 = vmatpush.msra.mxu0 0.0
        %364 = vmatpush.msra.mxu0 0.0
        %365 = vmatpush.msra.mxu0 0.0
        %v366 = vand.u32 %v195, 4294901760
        %367 = vmatpush.msra.mxu0 %v366
        %v368 = vand.u32 %v194, 4294901760
        %369 = vmatpush.msra.mxu0 %v368
        %v370 = vand.u32 %v206, 4294901760
        %v371 = vsub.f32 %v206, %v370
        %v372 = vand.u32 %v371, 4294901760
        %373 = vmatmul.f32.gmra.mxu0 %v372
        %v374 = vpop.f32.mrf.mxu0
        %v375 = vadd.f32 %v335, %v374
        %v376 = vand.u32 %v209, 4294901760
        %v377 = vsub.f32 %v209, %v376
        %v378 = vand.u32 %v377, 4294901760
        %379 = vmatmul.f32.gmra.mxu0 %v378
        %v380 = vpop.f32.mrf.mxu0
        %v381 = vadd.f32 %v340, %v380
        %v382 = vand.u32 %v212, 4294901760
        %v383 = vsub.f32 %v212, %v382
        %v384 = vand.u32 %v383, 4294901760
        %385 = vmatmul.f32.gmra.mxu0 %v384
        %v386 = vpop.f32.mrf.mxu0
        %v387 = vadd.f32 %v345, %v386
        %v388 = vand.u32 %v215, 4294901760
        %v389 = vsub.f32 %v215, %v388
        %v390 = vand.u32 %v389, 4294901760
        %391 = vmatmul.f32.gmra.mxu0 %v390
        %v392 = vpop.f32.mrf.mxu0
        %v393 = vadd.f32 %v350, %v392
        %394 = vdwg.mxu0
        %395 = vmatpush.msra.mxu0 0.0
        %396 = vmatpush.msra.mxu0 0.0
        %397 = vmatpush.msra.mxu0 0.0
        %398 = vmatpush.msra.mxu0 0.0
        %399 = vmatpush.msra.mxu0 0.0
        %400 = vmatpush.msra.mxu0 0.0
        %401 = vmatpush.msra.mxu0 0.0
        %402 = vmatpush.msra.mxu0 0.0
        %403 = vmatpush.msra.mxu0 0.0
        %404 = vmatpush.msra.mxu0 0.0
        %405 = vmatpush.msra.mxu0 0.0
        %406 = vmatpush.msra.mxu0 0.0
        %407 = vmatpush.msra.mxu0 0.0
        %408 = vmatpush.msra.mxu0 0.0
        %v409 = vand.u32 %v195, 4294901760
        %v410 = vsub.f32 %v195, %v409
        %v411 = vand.u32 %v410, 4294901760
        %412 = vmatpush.msra.mxu0 %v411
        %v413 = vand.u32 %v194, 4294901760
        %v414 = vsub.f32 %v194, %v413
        %v415 = vand.u32 %v414, 4294901760
        %416 = vmatpush.msra.mxu0 %v415
        %v417 = vand.u32 %v206, 4294901760
        %418 = vmatmul.f32.gmra.mxu0 %v417
        %v419 = vpop.f32.mrf.mxu0
        %v420 = vadd.f32 %v375, %v419
        %v421 = vand.u32 %v209, 4294901760
        %422 = vmatmul.f32.gmra.mxu0 %v421
        %v423 = vpop.f32.mrf.mxu0
        %v424 = vadd.f32 %v381, %v423
        %v425 = vand.u32 %v212, 4294901760
        %426 = vmatmul.f32.gmra.mxu0 %v425
        %v427 = vpop.f32.mrf.mxu0
        %v428 = vadd.f32 %v387, %v427
        %v429 = vand.u32 %v215, 4294901760
        %430 = vmatmul.f32.gmra.mxu0 %v429
        %v431 = vpop.f32.mrf.mxu0
        %v432 = vadd.f32 %v393, %v431
        %433 = vdwg.mxu0
        %434 = vmatpush.msra.mxu0 0.0
        %435 = vmatpush.msra.mxu0 0.0
        %436 = vmatpush.msra.mxu0 0.0
        %437 = vmatpush.msra.mxu0 0.0
        %438 = vmatpush.msra.mxu0 0.0
        %439 = vmatpush.msra.mxu0 0.0
        %440 = vmatpush.msra.mxu0 0.0
        %441 = vmatpush.msra.mxu0 0.0
        %442 = vmatpush.msra.mxu0 0.0
        %443 = vmatpush.msra.mxu0 0.0
        %444 = vmatpush.msra.mxu0 0.0
        %445 = vmatpush.msra.mxu0 0.0
        %446 = vmatpush.msra.mxu0 0.0
        %447 = vmatpush.msra.mxu0 0.0
        %v448 = vand.u32 %v195, 4294901760
        %449 = vmatpush.msra.mxu0 %v448
        %v450 = vand.u32 %v194, 4294901760
        %451 = vmatpush.msra.mxu0 %v450
        %v452 = vand.u32 %v206, 4294901760
        %453 = vmatmul.f32.gmra.mxu0 %v452
        %v454 = vpop.f32.mrf.mxu0
        %v455 = vadd.f32 %v420, %v454
        %v456 = vand.u32 %v209, 4294901760
        %457 = vmatmul.f32.gmra.mxu0 %v456
        %v458 = vpop.f32.mrf.mxu0
        %v459 = vadd.f32 %v424, %v458
        %v460 = vand.u32 %v212, 4294901760
        %461 = vmatmul.f32.gmra.mxu0 %v460
        %v462 = vpop.f32.mrf.mxu0
        %v463 = vadd.f32 %v428, %v462
        %v464 = vand.u32 %v215, 4294901760
        %465 = vmatmul.f32.gmra.mxu0 %v464
        %v466 = vpop.f32.mrf.mxu0
        %v467 = vadd.f32 %v432, %v466
        %468 = vdwg.mxu0
        %469 = vmatpush.msra.mxu0 0.0
        %470 = vmatpush.msra.mxu0 0.0
        %471 = vmatpush.msra.mxu0 0.0
        %472 = vmatpush.msra.mxu0 0.0
        %473 = vmatpush.msra.mxu0 0.0
        %474 = vmatpush.msra.mxu0 0.0
        %475 = vmatpush.msra.mxu0 0.0
        %476 = vmatpush.msra.mxu0 0.0
        %477 = vmatpush.msra.mxu0 0.0
        %478 = vmatpush.msra.mxu0 0.0
        %479 = vmatpush.msra.mxu0 0.0
        %480 = vmatpush.msra.mxu0 0.0
        %481 = vmatpush.msra.mxu0 0.0
        %482 = vmatpush.msra.mxu0 0.0
        %v483 = vand.u32 %v197, 4294901760
        %484 = vmatpush.msra.mxu0 %v483
        %v485 = vand.u32 %v196, 4294901760
        %486 = vmatpush.msra.mxu0 %v485
        %v487 = vand.u32 %v206, 4294901760
        %v488 = vsub.f32 %v206, %v487
        %v489 = vand.u32 %v488, 4294901760
        %v490 = vsub.f32 %v488, %v489
        %v491 = vand.u32 %v490, 4294901760
        %492 = vmatmul.f32.gmra.mxu0 %v491
        %v493 = vpop.f32.mrf.mxu0
        %v494 = vadd.f32 0.0, %v493
        %v495 = vand.u32 %v209, 4294901760
        %v496 = vsub.f32 %v209, %v495
        %v497 = vand.u32 %v496, 4294901760
        %v498 = vsub.f32 %v496, %v497
        %v499 = vand.u32 %v498, 4294901760
        %500 = vmatmul.f32.gmra.mxu0 %v499
        %v501 = vpop.f32.mrf.mxu0
        %v502 = vadd.f32 0.0, %v501
        %v503 = vand.u32 %v212, 4294901760
        %v504 = vsub.f32 %v212, %v503
        %v505 = vand.u32 %v504, 4294901760
        %v506 = vsub.f32 %v504, %v505
        %v507 = vand.u32 %v506, 4294901760
        %508 = vmatmul.f32.gmra.mxu0 %v507
        %v509 = vpop.f32.mrf.mxu0
        %v510 = vadd.f32 0.0, %v509
        %v511 = vand.u32 %v215, 4294901760
        %v512 = vsub.f32 %v215, %v511
        %v513 = vand.u32 %v512, 4294901760
        %v514 = vsub.f32 %v512, %v513
        %v515 = vand.u32 %v514, 4294901760
        %516 = vmatmul.f32.gmra.mxu0 %v515
        %v517 = vpop.f32.mrf.mxu0
        %v518 = vadd.f32 0.0, %v517
        %519 = vdwg.mxu0
        %520 = vmatpush.msra.mxu0 0.0
        %521 = vmatpush.msra.mxu0 0.0
        %522 = vmatpush.msra.mxu0 0.0
        %523 = vmatpush.msra.mxu0 0.0
        %524 = vmatpush.msra.mxu0 0.0
        %525 = vmatpush.msra.mxu0 0.0
        %526 = vmatpush.msra.mxu0 0.0
        %527 = vmatpush.msra.mxu0 0.0
        %528 = vmatpush.msra.mxu0 0.0
        %529 = vmatpush.msra.mxu0 0.0
        %530 = vmatpush.msra.mxu0 0.0
        %531 = vmatpush.msra.mxu0 0.0
        %532 = vmatpush.msra.mxu0 0.0
        %533 = vmatpush.msra.mxu0 0.0
        %v534 = vand.u32 %v197, 4294901760
        %v535 = vsub.f32 %v197, %v534
        %v536 = vand.u32 %v535, 4294901760
        %v537 = vsub.f32 %v535, %v536
        %v538 = vand.u32 %v537, 4294901760
        %539 = vmatpush.msra.mxu0 %v538
        %v540 = vand.u32 %v196, 4294901760
        %v541 = vsub.f32 %v196, %v540
        %v542 = vand.u32 %v541, 4294901760
        %v543 = vsub.f32 %v541, %v542
        %v544 = vand.u32 %v543, 4294901760
        %545 = vmatpush.msra.mxu0 %v544
        %v546 = vand.u32 %v206, 4294901760
        %547 = vmatmul.f32.gmra.mxu0 %v546
        %v548 = vpop.f32.mrf.mxu0
        %v549 = vadd.f32 %v494, %v548
        %v550 = vand.u32 %v209, 4294901760
        %551 = vmatmul.f32.gmra.mxu0 %v550
        %v552 = vpop.f32.mrf.mxu0
        %v553 = vadd.f32 %v502, %v552
        %v554 = vand.u32 %v212, 4294901760
        %555 = vmatmul.f32.gmra.mxu0 %v554
        %v556 = vpop.f32.mrf.mxu0
        %v557 = vadd.f32 %v510, %v556
        %v558 = vand.u32 %v215, 4294901760
        %559 = vmatmul.f32.gmra.mxu0 %v558
        %v560 = vpop.f32.mrf.mxu0
        %v561 = vadd.f32 %v518, %v560
        %562 = vdwg.mxu0
        %563 = vmatpush.msra.mxu0 0.0
        %564 = vmatpush.msra.mxu0 0.0
        %565 = vmatpush.msra.mxu0 0.0
        %566 = vmatpush.msra.mxu0 0.0
        %567 = vmatpush.msra.mxu0 0.0
        %568 = vmatpush.msra.mxu0 0.0
        %569 = vmatpush.msra.mxu0 0.0
        %570 = vmatpush.msra.mxu0 0.0
        %571 = vmatpush.msra.mxu0 0.0
        %572 = vmatpush.msra.mxu0 0.0
        %573 = vmatpush.msra.mxu0 0.0
        %574 = vmatpush.msra.mxu0 0.0
        %575 = vmatpush.msra.mxu0 0.0
        %576 = vmatpush.msra.mxu0 0.0
        %v577 = vand.u32 %v197, 4294901760
        %v578 = vsub.f32 %v197, %v577
        %579 = vmatpush.msra.mxu0 %v578
        %v580 = vand.u32 %v196, 4294901760
        %v581 = vsub.f32 %v196, %v580
        %582 = vmatpush.msra.mxu0 %v581
        %v583 = vand.u32 %v206, 4294901760
        %v584 = vsub.f32 %v206, %v583
        %585 = vmatmul.f32.gmra.mxu0 %v584
        %v586 = vpop.f32.mrf.mxu0
        %v587 = vadd.f32 %v549, %v586
        %v588 = vand.u32 %v209, 4294901760
        %v589 = vsub.f32 %v209, %v588
        %590 = vmatmul.f32.gmra.mxu0 %v589
        %v591 = vpop.f32.mrf.mxu0
        %v592 = vadd.f32 %v553, %v591
        %v593 = vand.u32 %v212, 4294901760
        %v594 = vsub.f32 %v212, %v593
        %595 = vmatmul.f32.gmra.mxu0 %v594
        %v596 = vpop.f32.mrf.mxu0
        %v597 = vadd.f32 %v557, %v596
        %v598 = vand.u32 %v215, 4294901760
        %v599 = vsub.f32 %v215, %v598
        %600 = vmatmul.f32.gmra.mxu0 %v599
        %v601 = vpop.f32.mrf.mxu0
        %v602 = vadd.f32 %v561, %v601
        %603 = vdwg.mxu0
        %604 = vmatpush.msra.mxu0 0.0
        %605 = vmatpush.msra.mxu0 0.0
        %606 = vmatpush.msra.mxu0 0.0
        %607 = vmatpush.msra.mxu0 0.0
        %608 = vmatpush.msra.mxu0 0.0
        %609 = vmatpush.msra.mxu0 0.0
        %610 = vmatpush.msra.mxu0 0.0
        %611 = vmatpush.msra.mxu0 0.0
        %612 = vmatpush.msra.mxu0 0.0
        %613 = vmatpush.msra.mxu0 0.0
        %614 = vmatpush.msra.mxu0 0.0
        %615 = vmatpush.msra.mxu0 0.0
        %616 = vmatpush.msra.mxu0 0.0
        %617 = vmatpush.msra.mxu0 0.0
        %v618 = vand.u32 %v197, 4294901760
        %619 = vmatpush.msra.mxu0 %v618
        %v620 = vand.u32 %v196, 4294901760
        %621 = vmatpush.msra.mxu0 %v620
        %v622 = vand.u32 %v206, 4294901760
        %v623 = vsub.f32 %v206, %v622
        %v624 = vand.u32 %v623, 4294901760
        %625 = vmatmul.f32.gmra.mxu0 %v624
        %v626 = vpop.f32.mrf.mxu0
        %v627 = vadd.f32 %v587, %v626
        %v628 = vand.u32 %v209, 4294901760
        %v629 = vsub.f32 %v209, %v628
        %v630 = vand.u32 %v629, 4294901760
        %631 = vmatmul.f32.gmra.mxu0 %v630
        %v632 = vpop.f32.mrf.mxu0
        %v633 = vadd.f32 %v592, %v632
        %v634 = vand.u32 %v212, 4294901760
        %v635 = vsub.f32 %v212, %v634
        %v636 = vand.u32 %v635, 4294901760
        %637 = vmatmul.f32.gmra.mxu0 %v636
        %v638 = vpop.f32.mrf.mxu0
        %v639 = vadd.f32 %v597, %v638
        %v640 = vand.u32 %v215, 4294901760
        %v641 = vsub.f32 %v215, %v640
        %v642 = vand.u32 %v641, 4294901760
        %643 = vmatmul.f32.gmra.mxu0 %v642
        %v644 = vpop.f32.mrf.mxu0
        %v645 = vadd.f32 %v602, %v644
        %646 = vdwg.mxu0
        %647 = vmatpush.msra.mxu0 0.0
        %648 = vmatpush.msra.mxu0 0.0
        %649 = vmatpush.msra.mxu0 0.0
        %650 = vmatpush.msra.mxu0 0.0
        %651 = vmatpush.msra.mxu0 0.0
        %652 = vmatpush.msra.mxu0 0.0
        %653 = vmatpush.msra.mxu0 0.0
        %654 = vmatpush.msra.mxu0 0.0
        %655 = vmatpush.msra.mxu0 0.0
        %656 = vmatpush.msra.mxu0 0.0
        %657 = vmatpush.msra.mxu0 0.0
        %658 = vmatpush.msra.mxu0 0.0
        %659 = vmatpush.msra.mxu0 0.0
        %660 = vmatpush.msra.mxu0 0.0
        %v661 = vand.u32 %v197, 4294901760
        %v662 = vsub.f32 %v197, %v661
        %v663 = vand.u32 %v662, 4294901760
        %664 = vmatpush.msra.mxu0 %v663
        %v665 = vand.u32 %v196, 4294901760
        %v666 = vsub.f32 %v196, %v665
        %v667 = vand.u32 %v666, 4294901760
        %668 = vmatpush.msra.mxu0 %v667
        %v669 = vand.u32 %v206, 4294901760
        %670 = vmatmul.f32.gmra.mxu0 %v669
        %v671 = vpop.f32.mrf.mxu0
        %v672 = vadd.f32 %v627, %v671
        %v673 = vand.u32 %v209, 4294901760
        %674 = vmatmul.f32.gmra.mxu0 %v673
        %v675 = vpop.f32.mrf.mxu0
        %v676 = vadd.f32 %v633, %v675
        %v677 = vand.u32 %v212, 4294901760
        %678 = vmatmul.f32.gmra.mxu0 %v677
        %v679 = vpop.f32.mrf.mxu0
        %v680 = vadd.f32 %v639, %v679
        %v681 = vand.u32 %v215, 4294901760
        %682 = vmatmul.f32.gmra.mxu0 %v681
        %v683 = vpop.f32.mrf.mxu0
        %v684 = vadd.f32 %v645, %v683
        %685 = vdwg.mxu0
        %686 = vmatpush.msra.mxu0 0.0
        %687 = vmatpush.msra.mxu0 0.0
        %688 = vmatpush.msra.mxu0 0.0
        %689 = vmatpush.msra.mxu0 0.0
        %690 = vmatpush.msra.mxu0 0.0
        %691 = vmatpush.msra.mxu0 0.0
        %692 = vmatpush.msra.mxu0 0.0
        %693 = vmatpush.msra.mxu0 0.0
        %694 = vmatpush.msra.mxu0 0.0
        %695 = vmatpush.msra.mxu0 0.0
        %696 = vmatpush.msra.mxu0 0.0
        %697 = vmatpush.msra.mxu0 0.0
        %698 = vmatpush.msra.mxu0 0.0
        %699 = vmatpush.msra.mxu0 0.0
        %v700 = vand.u32 %v197, 4294901760
        %701 = vmatpush.msra.mxu0 %v700
        %v702 = vand.u32 %v196, 4294901760
        %703 = vmatpush.msra.mxu0 %v702
        %v704 = vand.u32 %v206, 4294901760
        %705 = vmatmul.f32.gmra.mxu0 %v704
        %v706 = vpop.f32.mrf.mxu0
        %v707 = vadd.f32 %v672, %v706
        %v708 = vand.u32 %v209, 4294901760
        %709 = vmatmul.f32.gmra.mxu0 %v708
        %v710 = vpop.f32.mrf.mxu0
        %v711 = vadd.f32 %v676, %v710
        %v712 = vand.u32 %v212, 4294901760
        %713 = vmatmul.f32.gmra.mxu0 %v712
        %v714 = vpop.f32.mrf.mxu0
        %v715 = vadd.f32 %v680, %v714
        %v716 = vand.u32 %v215, 4294901760
        %717 = vmatmul.f32.gmra.mxu0 %v716
        %v718 = vpop.f32.mrf.mxu0
        %v719 = vadd.f32 %v684, %v718
        %720 = vdwg.mxu0
        %v722 = vsel %vm204, %v455, 0
        %v725 = vsel %vm204, %v459, 0
        %v728 = vsel %vm204, %v463, 0
        %v731 = vsel %vm204, %v467, 0
        %v734 = vsel %vm204, %v707, 0
        %v737 = vsel %vm204, %v711, 0
        %v740 = vsel %vm204, %v715, 0
        %v743 = vsel %vm204, %v719, 0
        %745 = vmatpush.msra.mxu0 0.0
        %746 = vmatpush.msra.mxu0 0.0
        %747 = vmatpush.msra.mxu0 0.0
        %748 = vmatpush.msra.mxu0 0.0
        %749 = vmatpush.msra.mxu0 0.0
        %750 = vmatpush.msra.mxu0 0.0
        %751 = vmatpush.msra.mxu0 0.0
        %752 = vmatpush.msra.mxu0 0.0
        %753 = vmatpush.msra.mxu0 0.0
        %754 = vmatpush.msra.mxu0 0.0
        %755 = vmatpush.msra.mxu0 0.0
        %756 = vmatpush.msra.mxu0 0.0
        %757 = vmatpush.msra.mxu0 0.0
        %758 = vmatpush.msra.mxu0 0.0
        %v759 = vand.u32 %v203, 4294901760
        %760 = vmatpush.msra.mxu0 %v759
        %v761 = vand.u32 %v202, 4294901760
        %762 = vmatpush.msra.mxu0 %v761
        %v763 = vand.u32 %v722, 4294901760
        %v764 = vsub.f32 %v722, %v763
        %v765 = vand.u32 %v764, 4294901760
        %v766 = vsub.f32 %v764, %v765
        %v767 = vand.u32 %v766, 4294901760
        %768 = vmatmul.f32.gmra.mxu0 %v767
        %v769 = vpop.f32.mrf.mxu0
        %v770 = vadd.f32 0.0, %v769
        %v771 = vand.u32 %v725, 4294901760
        %v772 = vsub.f32 %v725, %v771
        %v773 = vand.u32 %v772, 4294901760
        %v774 = vsub.f32 %v772, %v773
        %v775 = vand.u32 %v774, 4294901760
        %776 = vmatmul.f32.gmra.mxu0 %v775
        %v777 = vpop.f32.mrf.mxu0
        %v778 = vadd.f32 0.0, %v777
        %v779 = vand.u32 %v728, 4294901760
        %v780 = vsub.f32 %v728, %v779
        %v781 = vand.u32 %v780, 4294901760
        %v782 = vsub.f32 %v780, %v781
        %v783 = vand.u32 %v782, 4294901760
        %784 = vmatmul.f32.gmra.mxu0 %v783
        %v785 = vpop.f32.mrf.mxu0
        %v786 = vadd.f32 0.0, %v785
        %v787 = vand.u32 %v731, 4294901760
        %v788 = vsub.f32 %v731, %v787
        %v789 = vand.u32 %v788, 4294901760
        %v790 = vsub.f32 %v788, %v789
        %v791 = vand.u32 %v790, 4294901760
        %792 = vmatmul.f32.gmra.mxu0 %v791
        %v793 = vpop.f32.mrf.mxu0
        %v794 = vadd.f32 0.0, %v793
        %v795 = vand.u32 %v734, 4294901760
        %v796 = vsub.f32 %v734, %v795
        %v797 = vand.u32 %v796, 4294901760
        %v798 = vsub.f32 %v796, %v797
        %v799 = vand.u32 %v798, 4294901760
        %800 = vmatmul.f32.gmra.mxu0 %v799
        %v801 = vpop.f32.mrf.mxu0
        %v802 = vadd.f32 0.0, %v801
        %v803 = vand.u32 %v737, 4294901760
        %v804 = vsub.f32 %v737, %v803
        %v805 = vand.u32 %v804, 4294901760
        %v806 = vsub.f32 %v804, %v805
        %v807 = vand.u32 %v806, 4294901760
        %808 = vmatmul.f32.gmra.mxu0 %v807
        %v809 = vpop.f32.mrf.mxu0
        %v810 = vadd.f32 0.0, %v809
        %v811 = vand.u32 %v740, 4294901760
        %v812 = vsub.f32 %v740, %v811
        %v813 = vand.u32 %v812, 4294901760
        %v814 = vsub.f32 %v812, %v813
        %v815 = vand.u32 %v814, 4294901760
        %816 = vmatmul.f32.gmra.mxu0 %v815
        %v817 = vpop.f32.mrf.mxu0
        %v818 = vadd.f32 0.0, %v817
        %v819 = vand.u32 %v743, 4294901760
        %v820 = vsub.f32 %v743, %v819
        %v821 = vand.u32 %v820, 4294901760
        %v822 = vsub.f32 %v820, %v821
        %v823 = vand.u32 %v822, 4294901760
        %824 = vmatmul.f32.gmra.mxu0 %v823
        %v825 = vpop.f32.mrf.mxu0
        %v826 = vadd.f32 0.0, %v825
        %827 = vdwg.mxu0
        %828 = vmatpush.msra.mxu0 0.0
        %829 = vmatpush.msra.mxu0 0.0
        %830 = vmatpush.msra.mxu0 0.0
        %831 = vmatpush.msra.mxu0 0.0
        %832 = vmatpush.msra.mxu0 0.0
        %833 = vmatpush.msra.mxu0 0.0
        %834 = vmatpush.msra.mxu0 0.0
        %835 = vmatpush.msra.mxu0 0.0
        %836 = vmatpush.msra.mxu0 0.0
        %837 = vmatpush.msra.mxu0 0.0
        %838 = vmatpush.msra.mxu0 0.0
        %839 = vmatpush.msra.mxu0 0.0
        %840 = vmatpush.msra.mxu0 0.0
        %841 = vmatpush.msra.mxu0 0.0
        %v842 = vand.u32 %v203, 4294901760
        %v843 = vsub.f32 %v203, %v842
        %v844 = vand.u32 %v843, 4294901760
        %v845 = vsub.f32 %v843, %v844
        %v846 = vand.u32 %v845, 4294901760
        %847 = vmatpush.msra.mxu0 %v846
        %v848 = vand.u32 %v202, 4294901760
        %v849 = vsub.f32 %v202, %v848
        %v850 = vand.u32 %v849, 4294901760
        %v851 = vsub.f32 %v849, %v850
        %v852 = vand.u32 %v851, 4294901760
        %853 = vmatpush.msra.mxu0 %v852
        %v854 = vand.u32 %v722, 4294901760
        %855 = vmatmul.f32.gmra.mxu0 %v854
        %v856 = vpop.f32.mrf.mxu0
        %v857 = vadd.f32 %v770, %v856
        %v858 = vand.u32 %v725, 4294901760
        %859 = vmatmul.f32.gmra.mxu0 %v858
        %v860 = vpop.f32.mrf.mxu0
        %v861 = vadd.f32 %v778, %v860
        %v862 = vand.u32 %v728, 4294901760
        %863 = vmatmul.f32.gmra.mxu0 %v862
        %v864 = vpop.f32.mrf.mxu0
        %v865 = vadd.f32 %v786, %v864
        %v866 = vand.u32 %v731, 4294901760
        %867 = vmatmul.f32.gmra.mxu0 %v866
        %v868 = vpop.f32.mrf.mxu0
        %v869 = vadd.f32 %v794, %v868
        %v870 = vand.u32 %v734, 4294901760
        %871 = vmatmul.f32.gmra.mxu0 %v870
        %v872 = vpop.f32.mrf.mxu0
        %v873 = vadd.f32 %v802, %v872
        %v874 = vand.u32 %v737, 4294901760
        %875 = vmatmul.f32.gmra.mxu0 %v874
        %v876 = vpop.f32.mrf.mxu0
        %v877 = vadd.f32 %v810, %v876
        %v878 = vand.u32 %v740, 4294901760
        %879 = vmatmul.f32.gmra.mxu0 %v878
        %v880 = vpop.f32.mrf.mxu0
        %v881 = vadd.f32 %v818, %v880
        %v882 = vand.u32 %v743, 4294901760
        %883 = vmatmul.f32.gmra.mxu0 %v882
        %v884 = vpop.f32.mrf.mxu0
        %v885 = vadd.f32 %v826, %v884
        %886 = vdwg.mxu0
        %887 = vmatpush.msra.mxu0 0.0
        %888 = vmatpush.msra.mxu0 0.0
        %889 = vmatpush.msra.mxu0 0.0
        %890 = vmatpush.msra.mxu0 0.0
        %891 = vmatpush.msra.mxu0 0.0
        %892 = vmatpush.msra.mxu0 0.0
        %893 = vmatpush.msra.mxu0 0.0
        %894 = vmatpush.msra.mxu0 0.0
        %895 = vmatpush.msra.mxu0 0.0
        %896 = vmatpush.msra.mxu0 0.0
        %897 = vmatpush.msra.mxu0 0.0
        %898 = vmatpush.msra.mxu0 0.0
        %899 = vmatpush.msra.mxu0 0.0
        %900 = vmatpush.msra.mxu0 0.0
        %v901 = vand.u32 %v203, 4294901760
        %v902 = vsub.f32 %v203, %v901
        %903 = vmatpush.msra.mxu0 %v902
        %v904 = vand.u32 %v202, 4294901760
        %v905 = vsub.f32 %v202, %v904
        %906 = vmatpush.msra.mxu0 %v905
        %v907 = vand.u32 %v722, 4294901760
        %v908 = vsub.f32 %v722, %v907
        %909 = vmatmul.f32.gmra.mxu0 %v908
        %v910 = vpop.f32.mrf.mxu0
        %v911 = vadd.f32 %v857, %v910
        %v912 = vand.u32 %v725, 4294901760
        %v913 = vsub.f32 %v725, %v912
        %914 = vmatmul.f32.gmra.mxu0 %v913
        %v915 = vpop.f32.mrf.mxu0
        %v916 = vadd.f32 %v861, %v915
        %v917 = vand.u32 %v728, 4294901760
        %v918 = vsub.f32 %v728, %v917
        %919 = vmatmul.f32.gmra.mxu0 %v918
        %v920 = vpop.f32.mrf.mxu0
        %v921 = vadd.f32 %v865, %v920
        %v922 = vand.u32 %v731, 4294901760
        %v923 = vsub.f32 %v731, %v922
        %924 = vmatmul.f32.gmra.mxu0 %v923
        %v925 = vpop.f32.mrf.mxu0
        %v926 = vadd.f32 %v869, %v925
        %v927 = vand.u32 %v734, 4294901760
        %v928 = vsub.f32 %v734, %v927
        %929 = vmatmul.f32.gmra.mxu0 %v928
        %v930 = vpop.f32.mrf.mxu0
        %v931 = vadd.f32 %v873, %v930
        %v932 = vand.u32 %v737, 4294901760
        %v933 = vsub.f32 %v737, %v932
        %934 = vmatmul.f32.gmra.mxu0 %v933
        %v935 = vpop.f32.mrf.mxu0
        %v936 = vadd.f32 %v877, %v935
        %v937 = vand.u32 %v740, 4294901760
        %v938 = vsub.f32 %v740, %v937
        %939 = vmatmul.f32.gmra.mxu0 %v938
        %v940 = vpop.f32.mrf.mxu0
        %v941 = vadd.f32 %v881, %v940
        %v942 = vand.u32 %v743, 4294901760
        %v943 = vsub.f32 %v743, %v942
        %944 = vmatmul.f32.gmra.mxu0 %v943
        %v945 = vpop.f32.mrf.mxu0
        %v946 = vadd.f32 %v885, %v945
        %947 = vdwg.mxu0
        %948 = vmatpush.msra.mxu0 0.0
        %949 = vmatpush.msra.mxu0 0.0
        %950 = vmatpush.msra.mxu0 0.0
        %951 = vmatpush.msra.mxu0 0.0
        %952 = vmatpush.msra.mxu0 0.0
        %953 = vmatpush.msra.mxu0 0.0
        %954 = vmatpush.msra.mxu0 0.0
        %955 = vmatpush.msra.mxu0 0.0
        %956 = vmatpush.msra.mxu0 0.0
        %957 = vmatpush.msra.mxu0 0.0
        %958 = vmatpush.msra.mxu0 0.0
        %959 = vmatpush.msra.mxu0 0.0
        %960 = vmatpush.msra.mxu0 0.0
        %961 = vmatpush.msra.mxu0 0.0
        %v962 = vand.u32 %v203, 4294901760
        %963 = vmatpush.msra.mxu0 %v962
        %v964 = vand.u32 %v202, 4294901760
        %965 = vmatpush.msra.mxu0 %v964
        %v966 = vand.u32 %v722, 4294901760
        %v967 = vsub.f32 %v722, %v966
        %v968 = vand.u32 %v967, 4294901760
        %969 = vmatmul.f32.gmra.mxu0 %v968
        %v970 = vpop.f32.mrf.mxu0
        %v971 = vadd.f32 %v911, %v970
        %v972 = vand.u32 %v725, 4294901760
        %v973 = vsub.f32 %v725, %v972
        %v974 = vand.u32 %v973, 4294901760
        %975 = vmatmul.f32.gmra.mxu0 %v974
        %v976 = vpop.f32.mrf.mxu0
        %v977 = vadd.f32 %v916, %v976
        %v978 = vand.u32 %v728, 4294901760
        %v979 = vsub.f32 %v728, %v978
        %v980 = vand.u32 %v979, 4294901760
        %981 = vmatmul.f32.gmra.mxu0 %v980
        %v982 = vpop.f32.mrf.mxu0
        %v983 = vadd.f32 %v921, %v982
        %v984 = vand.u32 %v731, 4294901760
        %v985 = vsub.f32 %v731, %v984
        %v986 = vand.u32 %v985, 4294901760
        %987 = vmatmul.f32.gmra.mxu0 %v986
        %v988 = vpop.f32.mrf.mxu0
        %v989 = vadd.f32 %v926, %v988
        %v990 = vand.u32 %v734, 4294901760
        %v991 = vsub.f32 %v734, %v990
        %v992 = vand.u32 %v991, 4294901760
        %993 = vmatmul.f32.gmra.mxu0 %v992
        %v994 = vpop.f32.mrf.mxu0
        %v995 = vadd.f32 %v931, %v994
        %v996 = vand.u32 %v737, 4294901760
        %v997 = vsub.f32 %v737, %v996
        %v998 = vand.u32 %v997, 4294901760
        %999 = vmatmul.f32.gmra.mxu0 %v998
        %v1000 = vpop.f32.mrf.mxu0
        %v1001 = vadd.f32 %v936, %v1000
        %v1002 = vand.u32 %v740, 4294901760
        %v1003 = vsub.f32 %v740, %v1002
        %v1004 = vand.u32 %v1003, 4294901760
        %1005 = vmatmul.f32.gmra.mxu0 %v1004
        %v1006 = vpop.f32.mrf.mxu0
        %v1007 = vadd.f32 %v941, %v1006
        %v1008 = vand.u32 %v743, 4294901760
        %v1009 = vsub.f32 %v743, %v1008
        %v1010 = vand.u32 %v1009, 4294901760
        %1011 = vmatmul.f32.gmra.mxu0 %v1010
        %v1012 = vpop.f32.mrf.mxu0
        %v1013 = vadd.f32 %v946, %v1012
        %1014 = vdwg.mxu0
        %1015 = vmatpush.msra.mxu0 0.0
        %1016 = vmatpush.msra.mxu0 0.0
        %1017 = vmatpush.msra.mxu0 0.0
        %1018 = vmatpush.msra.mxu0 0.0
        %1019 = vmatpush.msra.mxu0 0.0
        %1020 = vmatpush.msra.mxu0 0.0
        %1021 = vmatpush.msra.mxu0 0.0
        %1022 = vmatpush.msra.mxu0 0.0
        %1023 = vmatpush.msra.mxu0 0.0
        %1024 = vmatpush.msra.mxu0 0.0
        %1025 = vmatpush.msra.mxu0 0.0
        %1026 = vmatpush.msra.mxu0 0.0
        %1027 = vmatpush.msra.mxu0 0.0
        %1028 = vmatpush.msra.mxu0 0.0
        %v1029 = vand.u32 %v203, 4294901760
        %v1030 = vsub.f32 %v203, %v1029
        %v1031 = vand.u32 %v1030, 4294901760
        %1032 = vmatpush.msra.mxu0 %v1031
        %v1033 = vand.u32 %v202, 4294901760
        %v1034 = vsub.f32 %v202, %v1033
        %v1035 = vand.u32 %v1034, 4294901760
        %1036 = vmatpush.msra.mxu0 %v1035
        %v1037 = vand.u32 %v722, 4294901760
        %1038 = vmatmul.f32.gmra.mxu0 %v1037
        %v1039 = vpop.f32.mrf.mxu0
        %v1040 = vadd.f32 %v971, %v1039
        %v1041 = vand.u32 %v725, 4294901760
        %1042 = vmatmul.f32.gmra.mxu0 %v1041
        %v1043 = vpop.f32.mrf.mxu0
        %v1044 = vadd.f32 %v977, %v1043
        %v1045 = vand.u32 %v728, 4294901760
        %1046 = vmatmul.f32.gmra.mxu0 %v1045
        %v1047 = vpop.f32.mrf.mxu0
        %v1048 = vadd.f32 %v983, %v1047
        %v1049 = vand.u32 %v731, 4294901760
        %1050 = vmatmul.f32.gmra.mxu0 %v1049
        %v1051 = vpop.f32.mrf.mxu0
        %v1052 = vadd.f32 %v989, %v1051
        %v1053 = vand.u32 %v734, 4294901760
        %1054 = vmatmul.f32.gmra.mxu0 %v1053
        %v1055 = vpop.f32.mrf.mxu0
        %v1056 = vadd.f32 %v995, %v1055
        %v1057 = vand.u32 %v737, 4294901760
        %1058 = vmatmul.f32.gmra.mxu0 %v1057
        %v1059 = vpop.f32.mrf.mxu0
        %v1060 = vadd.f32 %v1001, %v1059
        %v1061 = vand.u32 %v740, 4294901760
        %1062 = vmatmul.f32.gmra.mxu0 %v1061
        %v1063 = vpop.f32.mrf.mxu0
        %v1064 = vadd.f32 %v1007, %v1063
        %v1065 = vand.u32 %v743, 4294901760
        %1066 = vmatmul.f32.gmra.mxu0 %v1065
        %v1067 = vpop.f32.mrf.mxu0
        %v1068 = vadd.f32 %v1013, %v1067
        %1069 = vdwg.mxu0
        %1070 = vmatpush.msra.mxu0 0.0
        %1071 = vmatpush.msra.mxu0 0.0
        %1072 = vmatpush.msra.mxu0 0.0
        %1073 = vmatpush.msra.mxu0 0.0
        %1074 = vmatpush.msra.mxu0 0.0
        %1075 = vmatpush.msra.mxu0 0.0
        %1076 = vmatpush.msra.mxu0 0.0
        %1077 = vmatpush.msra.mxu0 0.0
        %1078 = vmatpush.msra.mxu0 0.0
        %1079 = vmatpush.msra.mxu0 0.0
        %1080 = vmatpush.msra.mxu0 0.0
        %1081 = vmatpush.msra.mxu0 0.0
        %1082 = vmatpush.msra.mxu0 0.0
        %1083 = vmatpush.msra.mxu0 0.0
        %v1084 = vand.u32 %v203, 4294901760
        %1085 = vmatpush.msra.mxu0 %v1084
        %v1086 = vand.u32 %v202, 4294901760
        %1087 = vmatpush.msra.mxu0 %v1086
        %v1088 = vand.u32 %v722, 4294901760
        %1089 = vmatmul.f32.gmra.mxu0 %v1088
        %v1090 = vpop.f32.mrf.mxu0
        %v1091 = vadd.f32 %v1040, %v1090
        %v1092 = vand.u32 %v725, 4294901760
        %1093 = vmatmul.f32.gmra.mxu0 %v1092
        %v1094 = vpop.f32.mrf.mxu0
        %v1095 = vadd.f32 %v1044, %v1094
        %v1096 = vand.u32 %v728, 4294901760
        %1097 = vmatmul.f32.gmra.mxu0 %v1096
        %v1098 = vpop.f32.mrf.mxu0
        %v1099 = vadd.f32 %v1048, %v1098
        %v1100 = vand.u32 %v731, 4294901760
        %1101 = vmatmul.f32.gmra.mxu0 %v1100
        %v1102 = vpop.f32.mrf.mxu0
        %v1103 = vadd.f32 %v1052, %v1102
        %v1104 = vand.u32 %v734, 4294901760
        %1105 = vmatmul.f32.gmra.mxu0 %v1104
        %v1106 = vpop.f32.mrf.mxu0
        %v1107 = vadd.f32 %v1056, %v1106
        %v1108 = vand.u32 %v737, 4294901760
        %1109 = vmatmul.f32.gmra.mxu0 %v1108
        %v1110 = vpop.f32.mrf.mxu0
        %v1111 = vadd.f32 %v1060, %v1110
        %v1112 = vand.u32 %v740, 4294901760
        %1113 = vmatmul.f32.gmra.mxu0 %v1112
        %v1114 = vpop.f32.mrf.mxu0
        %v1115 = vadd.f32 %v1064, %v1114
        %v1116 = vand.u32 %v743, 4294901760
        %1117 = vmatmul.f32.gmra.mxu0 %v1116
        %v1118 = vpop.f32.mrf.mxu0
        %v1119 = vadd.f32 %v1068, %v1118
        %1120 = vdwg.mxu0
        %vm1121 = vcmask 261120
        %1122 = vst.msk [vmem:[%s191] sm:$0xff] %vm1121, %v1091
        %1123 = vst.msk [vmem:[%s191 + $0x8] sm:$0xff] %vm1121, %v1095
        %1124 = vst.msk [vmem:[%s191 + $0x10] sm:$0xff] %vm1121, %v1099
        %1125 = vst.msk [vmem:[%s191 + $0x18] sm:$0xff] %vm1121, %v1103
        %1126 = vst.msk [vmem:[%s191 + $0x20] sm:$0xff] %vm1121, %v1107
        %1127 = vst.msk [vmem:[%s191 + $0x28] sm:$0xff] %vm1121, %v1111
        %1128 = vst.msk [vmem:[%s191 + $0x30] sm:$0xff] %vm1121, %v1115
        %1129 = vst.msk [vmem:[%s191 + $0x38] sm:$0xff] %vm1121, %v1119
        %s1130 = sand.u32 %s96, 1
        %s1131 = scalar_lea.sflag [#allocation4], %s1130
        %s1132 = sand.u32 %s96, 1
        %s1133 = smul.addr %s1132, 64
        %s1134 = scalar_lea.vmem [#allocation5], %s1133
        // Predicated region
        $region37: #{tpu_custom_call.1} parent=31 // pred_check
          %p1135 = pneg %p106
        $region38: #{tpu_custom_call.1} parent=31 // pred_check_branch
          %1137 = sbr.rel (%p1135) target = $region40
        $region39: #{tpu_custom_call.1} parent=31 // pred_region
          %s1138 = smul.u32 2, %s20
          %1140 = vsyncadd %s1131, 0
          %s1141 = smul.addr %s1138, 4
          %s1142 = smul.addr %s1141, 8
          %s1143 = scalar_lea.hbm %s3, %s1142
          %s1144 = sshll.u32 %s1134, 4
          %s1145 = int_to_ptr.vmem [resolvable:$true] %s1144
          %s1146 = sshll.u32 %s1143, 4
          %s1147 = int_to_ptr.hbm [resolvable:$true] %s1146
          %1152 = dma.vmem_to_hbm [thread:$0]  %s1145, 1024, %s1147, %s1131, 128, 128, 8
        $region40: #{tpu_custom_call.1} parent=31 // pred_fallthru
          _
      $region32: #{tpu_custom_call.1} parent=5 // pred_fallthru
        _
      %p1153 = scmp.le.s32.totalorder 2, %s15
      // Predicated region
      $region41: #{tpu_custom_call.1} parent=5 // pred_check
        %p1154 = pneg %p1153
      $region42: #{tpu_custom_call.1} parent=5 // pred_check_branch
        %1156 = sbr.rel (%p1154) target = $region44
      $region43: #{tpu_custom_call.1} parent=5 // pred_region
        %s1157 = ssub.s32 %s15, 2
        // Predicated region
        $region45: #{tpu_custom_call.1} parent=43 // pred_check
          %p1158 = pneg %p112
        $region46: #{tpu_custom_call.1} parent=43 // pred_check_branch
          %1160 = sbr.rel (%p1158) target = $region48
        $region47: #{tpu_custom_call.1} parent=43 // pred_region
          %s1161 = sand.u32 %s97, 1
          %s1162 = scalar_lea.sflag [#allocation4], %s1161
          %s1163 = sand.u32 %s97, 1
          %s1164 = smul.addr %s1163, 64
          %s1165 = scalar_lea.vmem [#allocation5], %s1164
          %1167 = dma.done %s1162, 1024
        $region48: #{tpu_custom_call.1} parent=43 // pred_fallthru
          _
      $region44: #{tpu_custom_call.1} parent=5 // pred_fallthru
        _
    $region6: #{tpu_custom_call.1} parent=1 // loop_footer
      %s19 = sadd.s32 1, %s15
    $region7: #{tpu_custom_call.1} parent=1 // loop_footer_branch
      %14 = sbr.rel target = $region3
    $region8: #{tpu_custom_call.1} parent=1 // loop_exit
      _
    %1168 = vsyncpa [#allocation3], 1
    %s1169 = scalar_lea.sflag [#allocation3], 1
    %1170 = vsyncpa %s1169, 1
    %1171 = vsyncpa [#allocation4], 1
    %s1172 = scalar_lea.sflag [#allocation4], 1
    %1173 = vsyncpa %s1172, 1

</llo_original>
